<compile_context>
chip_gen: v5e
topology: v5e:2x2
jax: 0.10.0
libtpu: 0.0.40
codegen_flags: <defaults>
</compile_context>

<pallas_src>
import functools

import jax
import jax.numpy as jnp
from jax.experimental import pallas as pl
from jax.experimental.pallas import tpu as pltpu


def _log_sigmoid(x):
    # Stable log(sigmoid(x)) = min(x, 0) - log1p(exp(-|x|)).
    return jnp.minimum(x, 0.0) - jnp.log1p(jnp.exp(-jnp.abs(x)))


def _nsl_kernel(in_ref, out_ref, noise_ref, part_ref, *,
                block_b, batch, n_noise, embed):
    iv = in_ref[...].astype(jnp.float32)      # (TB, E)
    ov = out_ref[...].astype(jnp.float32)     # (TB, E)

    # log(sigmoid(<out_b, in_b>))                          -> (TB, 1)
    pos_dot = jnp.sum(iv * ov, axis=-1, keepdims=True)
    total = _log_sigmoid(pos_dot)

    # sum_n log(sigmoid(-<noise_bn, in_b>))                -> (TB, 1)
    # Unrolled loop over the (small) number of noise samples keeps the live
    # working set (TB, E)-sized; the upcast happens per chunk, accumulation
    # stays f32.  The noise block is (TB, N*E), lane-dense.
    # TODO(synk): for very large N (>~64) switch this static unroll to a
    # lax.fori_loop over 128-aligned lane chunks.
    for n in range(n_noise):
        chunk = noise_ref[:, n * embed:(n + 1) * embed].astype(jnp.float32)
        dot_n = jnp.sum(chunk * iv, axis=-1, keepdims=True)   # (TB, 1)
        total = total + _log_sigmoid(-dot_n)

    # Mask rows beyond the true batch size (ragged last tile — no wrapper
    # padding; the clipped block's trailing rows hold unspecified data and the
    # select discards them before the sum).
    row0 = pl.program_id(0) * block_b
    rows = row0 + jax.lax.broadcasted_iota(jnp.int32, (block_b, 1), 0)
    total = jnp.where(rows < batch, total, 0.0)

    # Lane-dense per-tile partial: one full (8, 128) block per grid step.
    part_ref[...] = jnp.full(part_ref.shape, jnp.sum(total), dtype=jnp.float32)


def _round_up(x, m):
    return ((x + m - 1) // m) * m


def _cdiv(a, b):
    return -(-a // b)


def negative_sampling_loss(input_vectors, output_vectors, noise_vectors,
                           *, block_b=None):
    B, E = input_vectors.shape
    Bn, N, En = noise_vectors.shape
    assert Bn == B and En == E
    assert output_vectors.shape == (B, E)

    # (B, N, E) -> (B, N*E): metadata-only for a contiguous array.  The block
    # is then lane-dense (no per-row (8,128) padding of the (N, E) inner tile).
    noise2d = noise_vectors.reshape(B, N * E)

    itemsize = jnp.dtype(noise_vectors.dtype).itemsize
    row_mult = 16 if itemsize < 4 else 8   # sub-32-bit dtypes pack rows in pairs

    auto = block_b is None
    if auto:
        # Double-buffered input blocks + small per-row f32 temporaries must fit
        # comfortably under the smallest scoped-VMEM budget (v7x: 32 MiB scoped
        # of 64 MiB/TC physical).  ~10 MiB for blocks leaves >=2x headroom
        # under the 32 MiB vmem_limit on every generation.
        ne_lanes = _round_up(N * E, 128)
        e_lanes = _round_up(E, 128)
        per_row_bytes = 2 * (ne_lanes + 2 * e_lanes) * itemsize + 6 * e_lanes * 4
        budget_bytes = 10 * 1024 * 1024
        block_b = budget_bytes // max(per_row_bytes, 1)
        block_b = min(block_b, 1024)       # mem-bound throughput plateaus here

    block_b = max(8, (int(block_b) // 8) * 8)
    if itemsize < 4 and block_b >= 16:
        block_b = (block_b // 16) * 16     # bf16: keep sublane tiles full
    block_b = min(block_b, _round_up(B, row_mult))

    num_tiles = _cdiv(B, block_b)
    if auto and num_tiles % 2 == 1:
        # v7x megacore balance: prefer an even, balanced tile count >= 2 when
        # the batch is large enough to split.  Neutral on v5e/v6e (single TC).
        target = num_tiles + 1
        cand = _round_up(_cdiv(B, target), row_mult)
        if cand >= row_mult and cand < block_b:
            nt = _cdiv(B, cand)
            if nt % 2 == 0:
                block_b, num_tiles = cand, nt

    kernel = functools.partial(_nsl_kernel, block_b=block_b, batch=B,
                               n_noise=N, embed=E)

    partials = pl.pallas_call(
        kernel,
        out_shape=jax.ShapeDtypeStruct((num_tiles, 8, 128), jnp.float32),
        grid_spec=pltpu.PrefetchScalarGridSpec(
            num_scalar_prefetch=0,
            grid=(num_tiles,),
            in_specs=[
                pl.BlockSpec((block_b, E), lambda i: (i, 0)),
                pl.BlockSpec((block_b, E), lambda i: (i, 0)),
                pl.BlockSpec((block_b, N * E), lambda i: (i, 0)),
            ],
            out_specs=pl.BlockSpec((1, 8, 128), lambda i: (i, 0, 0)),
        ),
        compiler_params=pltpu.CompilerParams(
            dimension_semantics=("parallel",),
            vmem_limit_bytes=32 * 1024 * 1024,
        ),
    )(input_vectors, output_vectors, noise2d)

    # Final mean over the TRUE batch size, then negate (matches PyTorch).
    return -(jnp.sum(partials[:, 0, 0]) / jnp.float32(B))


def _reference(input_vectors, output_vectors, noise_vectors):
    # Pure-JAX reference matching the PyTorch forward exactly.
    iv = input_vectors.astype(jnp.float32)
    ov = output_vectors.astype(jnp.float32)
    nv = noise_vectors.astype(jnp.float32)
    out_loss = jnp.log(jax.nn.sigmoid(jnp.sum(iv * ov, axis=-1)))          # (B,)
    noise_dot = jnp.einsum("bne,be->bn", -nv, iv)                          # (B, N)
    noise_loss = jnp.sum(jnp.log(jax.nn.sigmoid(noise_dot)), axis=-1)      # (B,)
    return -jnp.mean(out_loss + noise_loss)


if __name__ == "__main__":
    key = jax.random.PRNGKey(0)
    k1, k2, k3, k4, k5, k6 = jax.random.split(key, 6)

    # Test 1: module-spec-sized toy problem (single tile, N*E not a multiple
    # of 128 — exercises the lane-dense reshape + static lane slicing).
    B, N, E = 8, 5, 32
    iv = jax.random.normal(k1, (B, E), dtype=jnp.float32)
    ov = jax.random.normal(k2, (B, E), dtype=jnp.float32)
    nv = jax.random.normal(k3, (B, N, E), dtype=jnp.float32)
    loss = negative_sampling_loss(iv, ov, nv)
    jax.block_until_ready(loss)
    ref = _reference(iv, ov, nv)
    assert jnp.allclose(loss, ref, rtol=1e-5, atol=1e-5), (loss, ref)

    # Test 2: auto block sizing, even-tile split, ragged last tile, no padding.
    B2, N2, E2 = 200, 16, 64
    iv2 = jax.random.normal(k4, (B2, E2), dtype=jnp.float32)
    ov2 = jax.random.normal(k5, (B2, E2), dtype=jnp.float32)
    nv2 = jax.random.normal(k6, (B2, N2, E2), dtype=jnp.float32)
    loss2 = negative_sampling_loss(iv2, ov2, nv2)
    jax.block_until_ready(loss2)
    ref2 = _reference(iv2, ov2, nv2)
    assert jnp.allclose(loss2, ref2, rtol=1e-4, atol=1e-4), (loss2, ref2)

    # Test 3: bf16 inputs (halves HBM traffic), explicit block + ragged tile;
    # accumulation stays f32 inside the kernel.
    iv_bf, ov_bf, nv_bf = (iv2.astype(jnp.bfloat16),
                           ov2.astype(jnp.bfloat16),
                           nv2.astype(jnp.bfloat16))
    loss3 = negative_sampling_loss(iv_bf, ov_bf, nv_bf, block_b=64)
    jax.block_until_ready(loss3)
    ref3 = _reference(iv_bf, ov_bf, nv_bf)
    assert jnp.allclose(loss3, ref3, rtol=2e-3, atol=2e-3), (loss3, ref3)

    print("KERNEL_OK")
</pallas_src>

<mosaic_0001>
module attributes {stable_mosaic.version = 11 : i64} {
  func.func @_nsl_kernel(%arg0: i32, %arg1: memref<8x32xf32, #tpu.memory_space<vmem>>, %arg2: memref<8x32xf32, #tpu.memory_space<vmem>>, %arg3: memref<8x160xf32, #tpu.memory_space<vmem>>, %arg4: memref<1x8x128xf32, #tpu.memory_space<vmem>>) attributes {dimension_semantics = [#tpu.dimension_semantics<parallel>], iteration_bounds = array<i64: 1>, scalar_prefetch = 0 : i64, scratch_operands = 0 : i64, tpu.core_type = #tpu.core_type<tc>, window_params = [{transform_indices = @transform_0, window_bounds = array<i64: 8, 32>}, {transform_indices = @transform_1, window_bounds = array<i64: 8, 32>}, {transform_indices = @transform_2, window_bounds = array<i64: 8, 160>}, {transform_indices = @transform_3, window_bounds = array<i64: 1, 8, 128>}]} {
    %c0 = arith.constant 0 : index
    %c0_0 = arith.constant 0 : index
    %0 = vector.load %arg1[%c0, %c0_0] : memref<8x32xf32, #tpu.memory_space<vmem>>, vector<8x32xf32>
    %c0_1 = arith.constant 0 : index
    %c0_2 = arith.constant 0 : index
    %1 = vector.load %arg2[%c0_1, %c0_2] : memref<8x32xf32, #tpu.memory_space<vmem>>, vector<8x32xf32>
    %2 = arith.mulf %0, %1 : vector<8x32xf32>
    %cst = arith.constant dense<0.000000e+00> : vector<8xf32>
    %3 = vector.multi_reduction <add>, %2, %cst [1] : vector<8x32xf32> to vector<8xf32>
    %4 = vector.shape_cast %3 : vector<8xf32> to vector<8x1xf32>
    %cst_3 = arith.constant 0.000000e+00 : f32
    %5 = vector.broadcast %cst_3 : f32 to vector<8x1xf32>
    %6 = arith.minimumf %4, %5 : vector<8x1xf32>
    %7 = math.absf %4 : vector<8x1xf32>
    %cst_4 = arith.constant 0.000000e+00 : f32
    %8 = vector.broadcast %cst_4 : f32 to vector<8x1xf32>
    %9 = arith.subf %8, %7 : vector<8x1xf32>
    %10 = math.exp %9 : vector<8x1xf32>
    %11 = math.log1p %10 : vector<8x1xf32>
    %12 = arith.subf %6, %11 : vector<8x1xf32>
    %c0_5 = arith.constant 0 : index
    %c0_6 = arith.constant 0 : index
    %13 = vector.load %arg3[%c0_5, %c0_6] : memref<8x160xf32, #tpu.memory_space<vmem>>, vector<8x32xf32>
    %14 = arith.mulf %13, %0 : vector<8x32xf32>
    %cst_7 = arith.constant dense<0.000000e+00> : vector<8xf32>
    %15 = vector.multi_reduction <add>, %14, %cst_7 [1] : vector<8x32xf32> to vector<8xf32>
    %16 = vector.shape_cast %15 : vector<8xf32> to vector<8x1xf32>
    %cst_8 = arith.constant 0.000000e+00 : f32
    %17 = vector.broadcast %cst_8 : f32 to vector<8x1xf32>
    %18 = arith.subf %17, %16 : vector<8x1xf32>
    %cst_9 = arith.constant 0.000000e+00 : f32
    %19 = vector.broadcast %cst_9 : f32 to vector<8x1xf32>
    %20 = arith.minimumf %18, %19 : vector<8x1xf32>
    %21 = math.absf %18 : vector<8x1xf32>
    %cst_10 = arith.constant 0.000000e+00 : f32
    %22 = vector.broadcast %cst_10 : f32 to vector<8x1xf32>
    %23 = arith.subf %22, %21 : vector<8x1xf32>
    %24 = math.exp %23 : vector<8x1xf32>
    %25 = math.log1p %24 : vector<8x1xf32>
    %26 = arith.subf %20, %25 : vector<8x1xf32>
    %27 = arith.addf %12, %26 : vector<8x1xf32>
    %c0_11 = arith.constant 0 : index
    %c32 = arith.constant 32 : index
    %28 = vector.load %arg3[%c0_11, %c32] : memref<8x160xf32, #tpu.memory_space<vmem>>, vector<8x32xf32>
    %29 = arith.mulf %28, %0 : vector<8x32xf32>
    %cst_12 = arith.constant dense<0.000000e+00> : vector<8xf32>
    %30 = vector.multi_reduction <add>, %29, %cst_12 [1] : vector<8x32xf32> to vector<8xf32>
    %31 = vector.shape_cast %30 : vector<8xf32> to vector<8x1xf32>
    %cst_13 = arith.constant 0.000000e+00 : f32
    %32 = vector.broadcast %cst_13 : f32 to vector<8x1xf32>
    %33 = arith.subf %32, %31 : vector<8x1xf32>
    %cst_14 = arith.constant 0.000000e+00 : f32
    %34 = vector.broadcast %cst_14 : f32 to vector<8x1xf32>
    %35 = arith.minimumf %33, %34 : vector<8x1xf32>
    %36 = math.absf %33 : vector<8x1xf32>
    %cst_15 = arith.constant 0.000000e+00 : f32
    %37 = vector.broadcast %cst_15 : f32 to vector<8x1xf32>
    %38 = arith.subf %37, %36 : vector<8x1xf32>
    %39 = math.exp %38 : vector<8x1xf32>
    %40 = math.log1p %39 : vector<8x1xf32>
    %41 = arith.subf %35, %40 : vector<8x1xf32>
    %42 = arith.addf %27, %41 : vector<8x1xf32>
    %c0_16 = arith.constant 0 : index
    %c64 = arith.constant 64 : index
    %43 = vector.load %arg3[%c0_16, %c64] : memref<8x160xf32, #tpu.memory_space<vmem>>, vector<8x32xf32>
    %44 = arith.mulf %43, %0 : vector<8x32xf32>
    %cst_17 = arith.constant dense<0.000000e+00> : vector<8xf32>
    %45 = vector.multi_reduction <add>, %44, %cst_17 [1] : vector<8x32xf32> to vector<8xf32>
    %46 = vector.shape_cast %45 : vector<8xf32> to vector<8x1xf32>
    %cst_18 = arith.constant 0.000000e+00 : f32
    %47 = vector.broadcast %cst_18 : f32 to vector<8x1xf32>
    %48 = arith.subf %47, %46 : vector<8x1xf32>
    %cst_19 = arith.constant 0.000000e+00 : f32
    %49 = vector.broadcast %cst_19 : f32 to vector<8x1xf32>
    %50 = arith.minimumf %48, %49 : vector<8x1xf32>
    %51 = math.absf %48 : vector<8x1xf32>
    %cst_20 = arith.constant 0.000000e+00 : f32
    %52 = vector.broadcast %cst_20 : f32 to vector<8x1xf32>
    %53 = arith.subf %52, %51 : vector<8x1xf32>
    %54 = math.exp %53 : vector<8x1xf32>
    %55 = math.log1p %54 : vector<8x1xf32>
    %56 = arith.subf %50, %55 : vector<8x1xf32>
    %57 = arith.addf %42, %56 : vector<8x1xf32>
    %c0_21 = arith.constant 0 : index
    %c96 = arith.constant 96 : index
    %58 = vector.load %arg3[%c0_21, %c96] : memref<8x160xf32, #tpu.memory_space<vmem>>, vector<8x32xf32>
    %59 = arith.mulf %58, %0 : vector<8x32xf32>
    %cst_22 = arith.constant dense<0.000000e+00> : vector<8xf32>
    %60 = vector.multi_reduction <add>, %59, %cst_22 [1] : vector<8x32xf32> to vector<8xf32>
    %61 = vector.shape_cast %60 : vector<8xf32> to vector<8x1xf32>
    %cst_23 = arith.constant 0.000000e+00 : f32
    %62 = vector.broadcast %cst_23 : f32 to vector<8x1xf32>
    %63 = arith.subf %62, %61 : vector<8x1xf32>
    %cst_24 = arith.constant 0.000000e+00 : f32
    %64 = vector.broadcast %cst_24 : f32 to vector<8x1xf32>
    %65 = arith.minimumf %63, %64 : vector<8x1xf32>
    %66 = math.absf %63 : vector<8x1xf32>
    %cst_25 = arith.constant 0.000000e+00 : f32
    %67 = vector.broadcast %cst_25 : f32 to vector<8x1xf32>
    %68 = arith.subf %67, %66 : vector<8x1xf32>
    %69 = math.exp %68 : vector<8x1xf32>
    %70 = math.log1p %69 : vector<8x1xf32>
    %71 = arith.subf %65, %70 : vector<8x1xf32>
    %72 = arith.addf %57, %71 : vector<8x1xf32>
    %c0_26 = arith.constant 0 : index
    %c128 = arith.constant 128 : index
    %73 = vector.load %arg3[%c0_26, %c128] : memref<8x160xf32, #tpu.memory_space<vmem>>, vector<8x32xf32>
    %74 = arith.mulf %73, %0 : vector<8x32xf32>
    %cst_27 = arith.constant dense<0.000000e+00> : vector<8xf32>
    %75 = vector.multi_reduction <add>, %74, %cst_27 [1] : vector<8x32xf32> to vector<8xf32>
    %76 = vector.shape_cast %75 : vector<8xf32> to vector<8x1xf32>
    %cst_28 = arith.constant 0.000000e+00 : f32
    %77 = vector.broadcast %cst_28 : f32 to vector<8x1xf32>
    %78 = arith.subf %77, %76 : vector<8x1xf32>
    %cst_29 = arith.constant 0.000000e+00 : f32
    %79 = vector.broadcast %cst_29 : f32 to vector<8x1xf32>
    %80 = arith.minimumf %78, %79 : vector<8x1xf32>
    %81 = math.absf %78 : vector<8x1xf32>
    %cst_30 = arith.constant 0.000000e+00 : f32
    %82 = vector.broadcast %cst_30 : f32 to vector<8x1xf32>
    %83 = arith.subf %82, %81 : vector<8x1xf32>
    %84 = math.exp %83 : vector<8x1xf32>
    %85 = math.log1p %84 : vector<8x1xf32>
    %86 = arith.subf %80, %85 : vector<8x1xf32>
    %87 = arith.addf %72, %86 : vector<8x1xf32>
    %c8_i32 = arith.constant 8 : i32
    %88 = arith.muli %arg0, %c8_i32 : i32
    %89 = tpu.iota {dimensions = array<i32: 0>} : vector<8x1xi32>
    %90 = vector.broadcast %88 : i32 to vector<8x1xi32>
    %91 = arith.addi %90, %89 : vector<8x1xi32>
    %c8_i32_31 = arith.constant 8 : i32
    %92 = vector.broadcast %c8_i32_31 : i32 to vector<8x1xi32>
    %93 = arith.cmpi slt, %91, %92 : vector<8x1xi32>
    %cst_32 = arith.constant 0.000000e+00 : f32
    %94 = vector.broadcast %cst_32 : f32 to vector<8x1xf32>
    %95 = arith.select %93, %87, %94 : vector<8x1xi1>, vector<8x1xf32>
    %96 = vector.shape_cast %95 : vector<8x1xf32> to vector<1x8x1xf32>
    %cst_33 = arith.constant dense<0.000000e+00> : vector<1xf32>
    %97 = vector.multi_reduction <add>, %96, %cst_33 [1, 2] : vector<1x8x1xf32> to vector<1xf32>
    %98 = vector.shape_cast %97 : vector<1xf32> to vector<1x1x1xf32>
    %99 = vector.extract %98[0, 0, 0] : f32 from vector<1x1x1xf32>
    %100 = vector.broadcast %99 : f32 to vector<1x8x128xf32>
    %c0_34 = arith.constant 0 : index
    %c0_35 = arith.constant 0 : index
    %c0_36 = arith.constant 0 : index
    %101 = vector.load %arg4[%c0_34, %c0_35, %c0_36] : memref<1x8x128xf32, #tpu.memory_space<vmem>>, vector<1x8x128xf32>
    tpu.vector_store %arg4[%c0_34, %c0_35, %c0_36], %100 {strides = array<i32>} : memref<1x8x128xf32, #tpu.memory_space<vmem>>, vector<1x8x128xf32>,
    return
  }
  func.func @transform_0(%arg0: i32) -> (i32, i32) {
    %c0_i32 = arith.constant 0 : i32
    %c0_i32_0 = arith.constant 0 : i32
    return %arg0, %c0_i32 : i32, i32
  }
  func.func @transform_1(%arg0: i32) -> (i32, i32) {
    %c0_i32 = arith.constant 0 : i32
    %c0_i32_0 = arith.constant 0 : i32
    return %arg0, %c0_i32 : i32, i32
  }
  func.func @transform_2(%arg0: i32) -> (i32, i32) {
    %c0_i32 = arith.constant 0 : i32
    %c0_i32_0 = arith.constant 0 : i32
    return %arg0, %c0_i32 : i32, i32
  }
  func.func @transform_3(%arg0: i32) -> (i32, i32, i32) {
    %c0_i32 = arith.constant 0 : i32
    %c0_i32_0 = arith.constant 0 : i32
    %c0_i32_1 = arith.constant 0 : i32
    return %arg0, %c0_i32, %c0_i32_0 : i32, i32, i32
  }
}

</mosaic_0001>

<llo_original>
// kernel: tpu_custom_call.1
$region0: #{tpu_custom_call.1}
  #allocation0 [shape = 'u32[]', space=smem, size = 0x4, offset = 0x4, fixed_abs, tag = 'smem constant byte address 0x4 - core index']
  #allocation1 [shape = 'u32[72,128]{1,0:T(1,128)}', space=vmem, size = 0x9000, scoped, tag = 'internal scratch']
  %s0 = inlined_call_operand.hbm [shape: f32[8,32], index: 0, kind: input, shape index: {}]
  %s1 = inlined_call_operand.hbm [shape: f32[8,32], index: 1, kind: input, shape index: {}]
  %s2 = inlined_call_operand.hbm [shape: f32[8,160], index: 2, kind: input, shape index: {}]
  %s3 = inlined_call_operand.hbm [shape: f32[1,8,128], index: 3, kind: output, shape index: {}]
  %s4 = sld [smem:[#allocation0]]
  $region34: #{tpu_custom_call.1} parent=0
    _
  %s6 = ssub.s32 1, %s4
  %s7 = scalar_select 0, %s6, %s4
  $region1: #{tpu_custom_call.1} parent=0
    #allocation2 [shape = 'u8[4096]{0}', space=vmem, size = 0x1000, scoped, tag = 'input window, operand 0, single buffered']
    #allocation3 [shape = 's32[1]{0}', space=sflag, size = 0x4, scoped, tag = 'scoped memory for tpu_custom_call.1']
    #allocation4 [shape = 's32[1]{0}', space=sflag, size = 0x4, scoped, tag = 'scoped memory for tpu_custom_call.1']
    #allocation5 [shape = 'u8[4096]{0}', space=vmem, size = 0x1000, scoped, tag = 'input window, operand 1, single buffered']
    #allocation6 [shape = 's32[1]{0}', space=sflag, size = 0x4, scoped, tag = 'scoped memory for tpu_custom_call.1']
    #allocation7 [shape = 'u8[8192]{0}', space=vmem, size = 0x2000, scoped, tag = 'input window, operand 2, single buffered']
    #allocation8 [shape = 'u8[4096]{0}', space=vmem, size = 0x1000, scoped, tag = 'output window, operand 0, single buffered']
    %8 = vsyncpa [#allocation3], 0
    %9 = vsyncpa [#allocation6], 0
    %10 = vsyncpa [#allocation4], 0
    // Predicated region
    $region2: #{tpu_custom_call.1} parent=1 // pred_check
      _
    $region3: #{tpu_custom_call.1} parent=1 // pred_check_branch
      %12 = sbr.rel (0) target = $region5
    $region4: #{tpu_custom_call.1} parent=1 // pred_region
      %14 = vsyncadd [#allocation3], 0
      %s16 = sshll.u32 %s0, 4
      %s17 = int_to_ptr.hbm [resolvable:$true] %s16
      %s18 = sshll.u32 [#allocation2], 4
      %s19 = int_to_ptr.vmem [resolvable:$true] %s18
      %21 = dma.hbm_to_vmem [thread:$0]  %s17, 128, %s19, [#allocation3]
    $region5: #{tpu_custom_call.1} parent=1 // pred_fallthru
      _
    // Predicated region
    $region6: #{tpu_custom_call.1} parent=1 // pred_check
      _
    $region7: #{tpu_custom_call.1} parent=1 // pred_check_branch
      %23 = sbr.rel (0) target = $region9
    $region8: #{tpu_custom_call.1} parent=1 // pred_region
      %25 = vsyncadd [#allocation6], 0
      %s27 = sshll.u32 %s1, 4
      %s28 = int_to_ptr.hbm [resolvable:$true] %s27
      %s29 = sshll.u32 [#allocation5], 4
      %s30 = int_to_ptr.vmem [resolvable:$true] %s29
      %32 = dma.hbm_to_vmem [thread:$0]  %s28, 128, %s30, [#allocation6]
    $region9: #{tpu_custom_call.1} parent=1 // pred_fallthru
      _
    // Predicated region
    $region10: #{tpu_custom_call.1} parent=1 // pred_check
      _
    $region11: #{tpu_custom_call.1} parent=1 // pred_check_branch
      %34 = sbr.rel (0) target = $region13
    $region12: #{tpu_custom_call.1} parent=1 // pred_region
      %36 = vsyncadd [#allocation6], 0
      %s38 = sshll.u32 %s2, 4
      %s39 = int_to_ptr.hbm [resolvable:$true] %s38
      %s40 = sshll.u32 [#allocation7], 4
      %s41 = int_to_ptr.vmem [resolvable:$true] %s40
      %43 = dma.hbm_to_vmem [thread:$0]  %s39, 256, %s41, [#allocation6]
    $region13: #{tpu_custom_call.1} parent=1 // pred_fallthru
      _
    // Predicated region
    $region14: #{tpu_custom_call.1} parent=1 // pred_check
      _
    $region15: #{tpu_custom_call.1} parent=1 // pred_check_branch
      %45 = sbr.rel (0) target = $region17
    $region16: #{tpu_custom_call.1} parent=1 // pred_region
      %47 = dma.done [#allocation3], 128
    $region17: #{tpu_custom_call.1} parent=1 // pred_fallthru
      _
    // Predicated region
    $region18: #{tpu_custom_call.1} parent=1 // pred_check
      _
    $region19: #{tpu_custom_call.1} parent=1 // pred_check_branch
      %49 = sbr.rel (0) target = $region21
    $region20: #{tpu_custom_call.1} parent=1 // pred_region
      %51 = dma.done [#allocation6], 128
    $region21: #{tpu_custom_call.1} parent=1 // pred_fallthru
      _
    // Predicated region
    $region22: #{tpu_custom_call.1} parent=1 // pred_check
      _
    $region23: #{tpu_custom_call.1} parent=1 // pred_check_branch
      %53 = sbr.rel (0) target = $region25
    $region24: #{tpu_custom_call.1} parent=1 // pred_region
      %55 = dma.done [#allocation6], 256
    $region25: #{tpu_custom_call.1} parent=1 // pred_fallthru
      _
    %v56 = vld [vmem:[#allocation2] sm:$0xff]
    %v57 = vld [vmem:[#allocation5] sm:$0xff]
    %v58 = vmul.f32 %v56, %v57
    %vm59 = vcmask 261120
    %v60 = vsel %vm59, %v58, 0.0
    %61 = vadd.xlane.f32.xlu0 %v60
    %v62 = vpop.xlane.xlu0 %61
    %v63 = vmin.f32 %v62, 0.0
    %v64 = vand.u32 2147483647, %v62
    %v65 = vsub.f32 0.0, %v64
    %v66 = vmul.f32 %v65, 1.442695
    %v67 = vpow.pop %v66
    %v68 = vadd.f32 %v67, 1.0
    %v69 = vlog2.pop %v68
    %v70 = vmul.f32 %v69, 0.6931472
    %v71 = vmul.f32 -0.5, %v67
    %v72 = vadd.f32 %v71, 1.0
    %v73 = vmul.f32 %v72, %v67
    %v74 = vand.u32 2147483647, %v67
    %vm75 = vcmp.lt.f32.partialorder %v74, 0.0004427343
    %v76 = vsel %vm75, %v73, %v70
    %v77 = vsub.f32 %v63, %v76
    %v78 = vld [vmem:[#allocation7] sm:$0xff]
    %v79 = vmul.f32 %v78, %v56
    %v80 = vsel %vm59, %v79, 0.0
    %81 = vadd.xlane.f32.xlu0 %v80
    %v82 = vpop.xlane.xlu0 %81
    %v83 = vsub.f32 0.0, %v82
    %v84 = vmin.f32 %v83, 0.0
    %v85 = vand.u32 2147483647, %v83
    %v86 = vsub.f32 0.0, %v85
    %v87 = vmul.f32 %v86, 1.442695
    %v88 = vpow.pop %v87
    %v89 = vadd.f32 %v88, 1.0
    %v90 = vlog2.pop %v89
    %v91 = vmul.f32 %v90, 0.6931472
    %v92 = vmul.f32 -0.5, %v88
    %v93 = vadd.f32 %v92, 1.0
    %v94 = vmul.f32 %v93, %v88
    %v95 = vand.u32 2147483647, %v88
    %vm96 = vcmp.lt.f32.partialorder %v95, 0.0004427343
    %v97 = vsel %vm96, %v94, %v91
    %v98 = vsub.f32 %v84, %v97
    %v99 = vadd.f32 %v77, %v98
    %101 = vrot.lane.b32.xlu0 %v56, 32
    %v102 = vpop.permute.xlu0 %101
    %v104 = vmul.f32 %v78, %v102
    %106 = vrot.lane.b32.xlu0 %v104, 96
    %v107 = vpop.permute.xlu0 %106
    %v109 = vsel %vm59, %v107, 0.0
    %110 = vadd.xlane.f32.xlu0 %v109
    %v111 = vpop.xlane.xlu0 %110
    %v112 = vsub.f32 0.0, %v111
    %v113 = vmin.f32 %v112, 0.0
    %v114 = vand.u32 2147483647, %v112
    %v115 = vsub.f32 0.0, %v114
    %v116 = vmul.f32 %v115, 1.442695
    %v117 = vpow.pop %v116
    %v118 = vadd.f32 %v117, 1.0
    %v119 = vlog2.pop %v118
    %v120 = vmul.f32 %v119, 0.6931472
    %v121 = vmul.f32 -0.5, %v117
    %v122 = vadd.f32 %v121, 1.0
    %v123 = vmul.f32 %v122, %v117
    %v124 = vand.u32 2147483647, %v117
    %vm125 = vcmp.lt.f32.partialorder %v124, 0.0004427343
    %v126 = vsel %vm125, %v123, %v120
    %v127 = vsub.f32 %v113, %v126
    %v128 = vadd.f32 %v99, %v127
    %129 = vrot.lane.b32.xlu0 %v56, 64
    %v130 = vpop.permute.xlu0 %129
    %v132 = vmul.f32 %v78, %v130
    %134 = vrot.lane.b32.xlu0 %v132, 64
    %v135 = vpop.permute.xlu0 %134
    %v137 = vsel %vm59, %v135, 0.0
    %138 = vadd.xlane.f32.xlu0 %v137
    %v139 = vpop.xlane.xlu0 %138
    %v140 = vsub.f32 0.0, %v139
    %v141 = vmin.f32 %v140, 0.0
    %v142 = vand.u32 2147483647, %v140
    %v143 = vsub.f32 0.0, %v142
    %v144 = vmul.f32 %v143, 1.442695
    %v145 = vpow.pop %v144
    %v146 = vadd.f32 %v145, 1.0
    %v147 = vlog2.pop %v146
    %v148 = vmul.f32 %v147, 0.6931472
    %v149 = vmul.f32 -0.5, %v145
    %v150 = vadd.f32 %v149, 1.0
    %v151 = vmul.f32 %v150, %v145
    %v152 = vand.u32 2147483647, %v145
    %vm153 = vcmp.lt.f32.partialorder %v152, 0.0004427343
    %v154 = vsel %vm153, %v151, %v148
    %v155 = vsub.f32 %v141, %v154
    %v156 = vadd.f32 %v128, %v155
    %157 = vrot.lane.b32.xlu0 %v56, 96
    %v158 = vpop.permute.xlu0 %157
    %v160 = vmul.f32 %v78, %v158
    %162 = vrot.lane.b32.xlu0 %v160, 32
    %v163 = vpop.permute.xlu0 %162
    %v165 = vsel %vm59, %v163, 0.0
    %166 = vadd.xlane.f32.xlu0 %v165
    %v167 = vpop.xlane.xlu0 %166
    %v168 = vsub.f32 0.0, %v167
    %v169 = vmin.f32 %v168, 0.0
    %v170 = vand.u32 2147483647, %v168
    %v171 = vsub.f32 0.0, %v170
    %v172 = vmul.f32 %v171, 1.442695
    %v173 = vpow.pop %v172
    %v174 = vadd.f32 %v173, 1.0
    %v175 = vlog2.pop %v174
    %v176 = vmul.f32 %v175, 0.6931472
    %v177 = vmul.f32 -0.5, %v173
    %v178 = vadd.f32 %v177, 1.0
    %v179 = vmul.f32 %v178, %v173
    %v180 = vand.u32 2147483647, %v173
    %vm181 = vcmp.lt.f32.partialorder %v180, 0.0004427343
    %v182 = vsel %vm181, %v179, %v176
    %v183 = vsub.f32 %v169, %v182
    %v184 = vadd.f32 %v156, %v183
    %v185 = vld [vmem:[#allocation7 + $0x8] sm:$0xff]
    %v186 = vmul.f32 %v185, %v56
    %v187 = vsel %vm59, %v186, 0.0
    %188 = vadd.xlane.f32.xlu0 %v187
    %v189 = vpop.xlane.xlu0 %188
    %v190 = vsub.f32 0.0, %v189
    %v191 = vmin.f32 %v190, 0.0
    %v192 = vand.u32 2147483647, %v190
    %v193 = vsub.f32 0.0, %v192
    %v194 = vmul.f32 %v193, 1.442695
    %v195 = vpow.pop %v194
    %v196 = vadd.f32 %v195, 1.0
    %v197 = vlog2.pop %v196
    %v198 = vmul.f32 %v197, 0.6931472
    %v199 = vmul.f32 -0.5, %v195
    %v200 = vadd.f32 %v199, 1.0
    %v201 = vmul.f32 %v200, %v195
    %v202 = vand.u32 2147483647, %v195
    %vm203 = vcmp.lt.f32.partialorder %v202, 0.0004427343
    %v204 = vsel %vm203, %v201, %v198
    %v205 = vsub.f32 %v191, %v204
    %v206 = vadd.f32 %v184, %v205
    %s207 = smul.u32 0, 8
    %v208 = vlaneseq
    %v209 = vshrl.u32 %v208, 7
    %v210 = vstv %s207
    %v211 = vadd.s32 %v210, %v209
    %vm212 = vcmp.lt.s32.totalorder %v211, 8
    %v213 = vsel %vm212, %v206, 0.0
    %vm214 = vcmask 7168
    %v215 = vsel %vm214, %v213, 0.0
    %216 = vadd.xlane.f32.xlu0 %v215
    %v217 = vpop.xlane.xlu0 %216
    %v218 = vrot.slane %v217, 4
    %v219 = vadd.f32 %v217, %v218
    %v220 = vrot.slane %v219, 2
    %v221 = vadd.f32 %v219, %v220
    %v222 = vrot.slane %v221, 1
    %v223 = vadd.f32 %v221, %v222
    %s224 = vtos %v223
    %v225 = vstv %s224
    %226 = vst [vmem:[#allocation8] sm:$0xff] %v225
    // Predicated region
    $region26: #{tpu_custom_call.1} parent=1 // pred_check
      _
    $region27: #{tpu_custom_call.1} parent=1 // pred_check_branch
      %228 = sbr.rel (0) target = $region29
    $region28: #{tpu_custom_call.1} parent=1 // pred_region
      %230 = vsyncadd [#allocation4], 0
      %s232 = sshll.u32 [#allocation8], 4
      %s233 = int_to_ptr.vmem [resolvable:$true] %s232
      %s234 = sshll.u32 %s3, 4
      %s235 = int_to_ptr.hbm [resolvable:$true] %s234
      %237 = dma.vmem_to_hbm [thread:$0]  %s233, 128, %s235, [#allocation4]
    $region29: #{tpu_custom_call.1} parent=1 // pred_fallthru
      _
    // Predicated region
    $region30: #{tpu_custom_call.1} parent=1 // pred_check
      _
    $region31: #{tpu_custom_call.1} parent=1 // pred_check_branch
      %239 = sbr.rel (0) target = $region33
    $region32: #{tpu_custom_call.1} parent=1 // pred_region
      %241 = dma.done [#allocation4], 128
    $region33: #{tpu_custom_call.1} parent=1 // pred_fallthru
      _
    %242 = vsyncpa [#allocation3], 1
    %243 = vsyncpa [#allocation6], 1
    %244 = vsyncpa [#allocation4], 1

</llo_original>
